<compile_context>
chip_gen: v7x
topology: tpu7x:2x2x1
jax: 0.10.0
libtpu: 0.0.40
codegen_flags: <defaults>
</compile_context>

<pallas_src>
import jax
import jax.numpy as jnp
from jax.experimental import pallas as pl
from jax.experimental.pallas import tpu as pltpu


# ---------------------------------------------------------------------------
# Kernel
# ---------------------------------------------------------------------------
def _fused_affine_kernel(x_ref, w_ref, b_ref, o_ref):
    # x: [tile_b, V]  bf16 0/1 bag-of-words indicators (exact in bf16)
    # w: [V, D]       f32 fused weight  W1^T @ W2^T @ W3^T   (VMEM-resident)
    # b: [1, D]       f32 fused bias                          (VMEM-resident)
    # o: [tile_b, D]  f32
    x = x_ref[...].astype(jnp.float32)        # in-VMEM widen; HBM stream is bf16
    y = jnp.dot(x, w_ref[...],
                preferred_element_type=jnp.float32,
                precision=jax.lax.Precision.HIGHEST)
    o_ref[...] = (y + b_ref[...]).astype(o_ref.dtype)


# ---------------------------------------------------------------------------
# One-time parameter preprocessing (NOT on the per-call path)
# ---------------------------------------------------------------------------
def fuse_params(params):
    """Collapse the activation-free 3-layer MLP into one affine map (exact,
    since forward() applies no nonlinearity). Right-associated so the cost is
    O(V^2 * D) with a VxD intermediate. Fused weight/bias kept in f32."""
    w1, b1 = params["w1"], params["b1"]
    w2, b2 = params["w2"], params["b2"]
    w3, b3 = params["w3"], params["b3"]

    w23 = w2.T @ w3.T                                   # [V, D]
    wf = (w1.T @ w23).astype(jnp.float32)               # [V, D]
    bf = (b1 @ w23 + b2 @ w3.T + b3).astype(jnp.float32)  # [D]
    return {"wf": wf, "bf": bf.reshape(1, -1)}


# ---------------------------------------------------------------------------
# Tiling heuristic
# ---------------------------------------------------------------------------
def _round_up(x, m):
    return ((x + m - 1) // m) * m


def _pick_tile_b(B, V, x_itemsize):
    """Batch-tile size: ~2 MiB per x-tile buffer (double-buffered by the
    pipeline), floor 128 / cap 2048 rows, and >= ~8 grid steps for large B so
    v7x's two TensorCores both get work and per-step overhead amortizes."""
    if B <= 128:
        return B                       # single full-extent block (allowed)
    budget = 2 << 20                   # bytes per x-tile buffer
    t = budget // max(1, V * x_itemsize)
    t = max(128, min(2048, (t // 8) * 8))
    # keep roughly >= 8 grid steps
    t = min(t, max(128, _round_up(pl.cdiv(B, 8), 8)))
    return t


# ---------------------------------------------------------------------------
# Forward wrapper
# ---------------------------------------------------------------------------
def network_forward(x, fused, tile_b=None):
    """y = x @ Wf + bf  via a single Pallas kernel. Output is (B, D) f32."""
    B, V = x.shape
    wf, bf = fused["wf"], fused["bf"]
    D = wf.shape[1]

    if tile_b is None:
        tile_b = _pick_tile_b(B, V, x.dtype.itemsize)
    grid = (pl.cdiv(B, tile_b),)

    cost = pl.CostEstimate(
        flops=2 * B * V * D,
        transcendentals=0,
        bytes_accessed=(B * V * x.dtype.itemsize          # x stream
                        + V * D * 4 + D * 4               # resident weight/bias
                        + B * D * 4),                     # output
    )

    return pl.pallas_call(
        _fused_affine_kernel,
        out_shape=jax.ShapeDtypeStruct((B, D), jnp.float32),
        grid=grid,
        in_specs=[
            pl.BlockSpec((tile_b, V), lambda i: (i, 0)),   # x batch tile
            pl.BlockSpec((V, D), lambda i: (0, 0)),        # fused W (resident)
            pl.BlockSpec((1, D), lambda i: (0, 0)),        # fused bias (resident)
        ],
        out_specs=pl.BlockSpec((tile_b, D), lambda i: (i, 0)),
        compiler_params=pltpu.CompilerParams(
            dimension_semantics=("parallel",),
        ),
        cost_estimate=cost,
    )(x, wf, bf)


# ---------------------------------------------------------------------------
# Parameter init (mimics nn.Linear uniform(-1/sqrt(fan_in), 1/sqrt(fan_in)))
# ---------------------------------------------------------------------------
def init_params(key, vocab, n_datatypes):
    ks = jax.random.split(key, 6)
    bound = 1.0 / jnp.sqrt(jnp.float32(vocab))
    u = lambda k, shape: jax.random.uniform(
        k, shape, dtype=jnp.float32, minval=-bound, maxval=bound)
    return {
        "w1": u(ks[0], (vocab, vocab)),
        "b1": u(ks[1], (vocab,)),
        "w2": u(ks[2], (vocab, vocab)),
        "b2": u(ks[3], (vocab,)),
        "w3": u(ks[4], (n_datatypes, vocab)),
        "b3": u(ks[5], (n_datatypes,)),
    }


def _reference_forward(x_f32, params):
    r = x_f32 @ params["w1"].T + params["b1"]
    r = r @ params["w2"].T + params["b2"]
    return r @ params["w3"].T + params["b3"]


if __name__ == "__main__":
    # Synthetic sizes: vocab (global word bins) = 128, datatypes = 8, batch = 8.
    B, V, D = 8, 128, 8

    key = jax.random.PRNGKey(0)
    k_x, k_p = jax.random.split(key)

    # Bag-of-words input: 0/1 indicators, produced upstream in bf16 (exact).
    x = (jax.random.uniform(k_x, (B, V)) < 0.1).astype(jnp.bfloat16)
    params = init_params(k_p, V, D)
    fused = fuse_params(params)          # one-time parameter preprocessing

    y = jax.block_until_ready(network_forward(x, fused))
    assert y.shape == (B, D) and y.dtype == jnp.float32

    ref = _reference_forward(x.astype(jnp.float32), params)
    assert jnp.allclose(y, ref, atol=1e-3, rtol=1e-3)

    # Exercise the multi-step grid + ragged last tile (masked store) path.
    B2 = 20
    x2 = (jax.random.uniform(jax.random.PRNGKey(1), (B2, V)) < 0.1).astype(jnp.bfloat16)
    y2 = jax.block_until_ready(network_forward(x2, fused, tile_b=8))
    ref2 = _reference_forward(x2.astype(jnp.float32), params)
    assert y2.shape == (B2, D)
    assert jnp.allclose(y2, ref2, atol=1e-3, rtol=1e-3)

    print("KERNEL_OK")
</pallas_src>

<mosaic_0001>
module attributes {stable_mosaic.version = 11 : i64} {
  func.func @_fused_affine_kernel(%arg0: i32, %arg1: memref<8x128xbf16, #tpu.memory_space<vmem>>, %arg2: memref<128x8xf32, #tpu.memory_space<vmem>>, %arg3: memref<1x8xf32, #tpu.memory_space<vmem>>, %arg4: memref<8x8xf32, #tpu.memory_space<vmem>>) attributes {dimension_semantics = [#tpu.dimension_semantics<parallel>], iteration_bounds = array<i64: 1>, scalar_prefetch = 0 : i64, scratch_operands = 0 : i64, tpu.core_type = #tpu.core_type<tc>, window_params = [{transform_indices = @transform_0, window_bounds = array<i64: 8, 128>}, {pipeline_mode = #tpu.pipeline_mode<synchronous>, transform_indices = @transform_1, window_bounds = array<i64: 128, 8>}, {pipeline_mode = #tpu.pipeline_mode<synchronous>, transform_indices = @transform_2, window_bounds = array<i64: 1, 8>}, {transform_indices = @transform_3, window_bounds = array<i64: 8, 8>}]} {
    %c0 = arith.constant 0 : index
    %c0_0 = arith.constant 0 : index
    %0 = vector.load %arg1[%c0, %c0_0] : memref<8x128xbf16, #tpu.memory_space<vmem>>, vector<8x128xbf16>
    %1 = arith.extf %0 : vector<8x128xbf16> to vector<8x128xf32>
    %c0_1 = arith.constant 0 : index
    %c0_2 = arith.constant 0 : index
    %2 = vector.load %arg2[%c0_1, %c0_2] : memref<128x8xf32, #tpu.memory_space<vmem>>, vector<128x8xf32>
    %cst = arith.constant dense<0.000000e+00> : vector<8x8xf32>
    %3 = tpu.matmul %1, %2, %cst {dimension_numbers = #tpu.dot_dimension_numbers<[1], [0], [0], [1], [0, 0, 1, 1], [], []>, precision = #tpu.contract_precision<fp32>} : vector<8x128xf32>, vector<128x8xf32>, vector<8x8xf32> -> vector<8x8xf32>
    %c0_3 = arith.constant 0 : index
    %c0_4 = arith.constant 0 : index
    %4 = vector.load %arg3[%c0_3, %c0_4] : memref<1x8xf32, #tpu.memory_space<vmem>>, vector<1x8xf32>
    %5 = vector.broadcast %4 : vector<1x8xf32> to vector<8x8xf32>
    %6 = arith.addf %3, %5 : vector<8x8xf32>
    %c0_5 = arith.constant 0 : index
    %c0_6 = arith.constant 0 : index
    %7 = vector.load %arg4[%c0_5, %c0_6] : memref<8x8xf32, #tpu.memory_space<vmem>>, vector<8x8xf32>
    tpu.vector_store %arg4[%c0_5, %c0_6], %6 {strides = array<i32>} : memref<8x8xf32, #tpu.memory_space<vmem>>, vector<8x8xf32>,
    return
  }
  func.func @transform_0(%arg0: i32) -> (i32, i32) {
    %c0_i32 = arith.constant 0 : i32
    %c0_i32_0 = arith.constant 0 : i32
    return %arg0, %c0_i32 : i32, i32
  }
  func.func @transform_1(%arg0: i32) -> (i32, i32) {
    %c0_i32 = arith.constant 0 : i32
    %c0_i32_0 = arith.constant 0 : i32
    %c0_i32_1 = arith.constant 0 : i32
    return %c0_i32, %c0_i32_0 : i32, i32
  }
  func.func @transform_2(%arg0: i32) -> (i32, i32) {
    %c0_i32 = arith.constant 0 : i32
    %c0_i32_0 = arith.constant 0 : i32
    %c0_i32_1 = arith.constant 0 : i32
    return %c0_i32, %c0_i32_0 : i32, i32
  }
  func.func @transform_3(%arg0: i32) -> (i32, i32) {
    %c0_i32 = arith.constant 0 : i32
    %c0_i32_0 = arith.constant 0 : i32
    return %arg0, %c0_i32 : i32, i32
  }
}

</mosaic_0001>

<llo_original>
// kernel: tpu_custom_call.1
$region0: #{tpu_custom_call.1}
  #allocation0 [shape = 'u32[]', space=smem, size = 0x4, offset = 0x4, fixed_abs, tag = 'smem constant byte address 0x4 - core index']
  #allocation1 [shape = 'u32[144,128]{1,0:T(1,128)}', space=vmem, size = 0x12000, scoped, tag = 'internal scratch']
  %s0 = inlined_call_operand.vmem [shape: bf16[8,128], index: 0, kind: input, shape index: {}]
  %s1 = inlined_call_operand.vmem [shape: f32[128,8], index: 1, kind: input, shape index: {}]
  %s2 = inlined_call_operand.vmem [shape: f32[1,8], index: 2, kind: input, shape index: {}]
  %s3 = inlined_call_operand.hbm [shape: f32[8,8], index: 3, kind: output, shape index: {}]
  %s4 = sld [smem:[#allocation0]]
  $region22: #{tpu_custom_call.1} parent=0
    _
  %s6 = ssub.s32 1, %s4
  %s7 = scalar_select 0, %s6, %s4
  $region1: #{tpu_custom_call.1} parent=0
    #allocation2 [shape = 'u8[4096]{0}', space=vmem, size = 0x1000, scoped, tag = 'output window, operand 0, single buffered']
    #allocation3 [shape = 's32[1]{0}', space=sflag, size = 0x4, scoped, tag = 'scoped memory for tpu_custom_call.1']
    %8 = vsyncpa [#allocation3], 0
    // Predicated region
    $region2: #{tpu_custom_call.1} parent=1 // pred_check
      _
    $region3: #{tpu_custom_call.1} parent=1 // pred_check_branch
      %10 = sbr.rel (0) target = $region5
    $region4: #{tpu_custom_call.1} parent=1 // pred_region
      _
    $region5: #{tpu_custom_call.1} parent=1 // pred_fallthru
      _
    // Predicated region
    $region6: #{tpu_custom_call.1} parent=1 // pred_check
      _
    $region7: #{tpu_custom_call.1} parent=1 // pred_check_branch
      %12 = sbr.rel (0) target = $region9
    $region8: #{tpu_custom_call.1} parent=1 // pred_region
      _
    $region9: #{tpu_custom_call.1} parent=1 // pred_fallthru
      _
    // Predicated region
    $region10: #{tpu_custom_call.1} parent=1 // pred_check
      _
    $region11: #{tpu_custom_call.1} parent=1 // pred_check_branch
      %14 = sbr.rel (0) target = $region13
    $region12: #{tpu_custom_call.1} parent=1 // pred_region
      _
    $region13: #{tpu_custom_call.1} parent=1 // pred_fallthru
      _
    %v15 = vld [vmem:[%s0] sm:$0xf]
    %v16 = vunpack.c.l.bf16 %v15
    %v17 = vld [vmem:[%s1] sm:$0xff]
    %v18 = vld [vmem:[%s1 + $0x8] sm:$0xff]
    %v19 = vld [vmem:[%s1 + $0x10] sm:$0xff]
    %v20 = vld [vmem:[%s1 + $0x18] sm:$0xff]
    %v21 = vld [vmem:[%s1 + $0x20] sm:$0xff]
    %v22 = vld [vmem:[%s1 + $0x28] sm:$0xff]
    %v23 = vld [vmem:[%s1 + $0x30] sm:$0xff]
    %v24 = vld [vmem:[%s1 + $0x38] sm:$0xff]
    %v25 = vld [vmem:[%s1 + $0x40] sm:$0xff]
    %v26 = vld [vmem:[%s1 + $0x48] sm:$0xff]
    %v27 = vld [vmem:[%s1 + $0x50] sm:$0xff]
    %v28 = vld [vmem:[%s1 + $0x58] sm:$0xff]
    %v29 = vld [vmem:[%s1 + $0x60] sm:$0xff]
    %v30 = vld [vmem:[%s1 + $0x68] sm:$0xff]
    %v31 = vld [vmem:[%s1 + $0x70] sm:$0xff]
    %v32 = vld [vmem:[%s1 + $0x78] sm:$0xff]
    %v33 = vld [vmem:[%s2] sm:$0x1]
    %v35 = vlaneseq
    %v36 = vshrl.u32 %v35, 7
    %v37 = vsub.s32 0, %v36
    %v38 = vrot.slane %v33, %v37
    %40 = vmatprep.subr.mxu0 0.0
    %v41 = vand.u32 %v17, 4294901760
    %42 = vmatpush1.msra.mxu0 %v41
    %43 = vmatprep.subr.mxu0 0.0
    %v44 = vand.u32 %v18, 4294901760
    %45 = vmatpush1.msra.mxu0 %v44
    %46 = vmatprep.subr.mxu0 0.0
    %v47 = vand.u32 %v19, 4294901760
    %48 = vmatpush1.msra.mxu0 %v47
    %49 = vmatprep.subr.mxu0 0.0
    %v50 = vand.u32 %v20, 4294901760
    %51 = vmatpush1.msra.mxu0 %v50
    %52 = vmatprep.subr.mxu0 0.0
    %v53 = vand.u32 %v21, 4294901760
    %54 = vmatpush1.msra.mxu0 %v53
    %55 = vmatprep.subr.mxu0 0.0
    %v56 = vand.u32 %v22, 4294901760
    %57 = vmatpush1.msra.mxu0 %v56
    %58 = vmatprep.subr.mxu0 0.0
    %v59 = vand.u32 %v23, 4294901760
    %60 = vmatpush1.msra.mxu0 %v59
    %61 = vmatprep.subr.mxu0 0.0
    %v62 = vand.u32 %v24, 4294901760
    %63 = vmatpush1.msra.mxu0 %v62
    %64 = vmatprep.subr.mxu0 0.0
    %v65 = vand.u32 %v25, 4294901760
    %66 = vmatpush1.msra.mxu0 %v65
    %67 = vmatprep.subr.mxu0 0.0
    %v68 = vand.u32 %v26, 4294901760
    %69 = vmatpush1.msra.mxu0 %v68
    %70 = vmatprep.subr.mxu0 0.0
    %v71 = vand.u32 %v27, 4294901760
    %72 = vmatpush1.msra.mxu0 %v71
    %73 = vmatprep.subr.mxu0 0.0
    %v74 = vand.u32 %v28, 4294901760
    %75 = vmatpush1.msra.mxu0 %v74
    %76 = vmatprep.subr.mxu0 0.0
    %v77 = vand.u32 %v29, 4294901760
    %78 = vmatpush1.msra.mxu0 %v77
    %79 = vmatprep.subr.mxu0 0.0
    %v80 = vand.u32 %v30, 4294901760
    %81 = vmatpush1.msra.mxu0 %v80
    %82 = vmatprep.subr.mxu0 0.0
    %v83 = vand.u32 %v31, 4294901760
    %84 = vmatpush1.msra.mxu0 %v83
    %85 = vmatprep.subr.mxu0 0.0
    %v86 = vand.u32 %v32, 4294901760
    %87 = vmatpush1.msra.mxu0 %v86
    %88 = vmatprep.subr.mxu0 0.0
    %89 = vmatpush1.msra.mxu0 0.0
    %90 = vmatprep.subr.mxu0 0.0
    %91 = vmatpush1.msra.mxu0 0.0
    %92 = vmatprep.subr.mxu0 0.0
    %93 = vmatpush1.msra.mxu0 0.0
    %94 = vmatprep.subr.mxu0 0.0
    %95 = vmatpush1.msra.mxu0 0.0
    %96 = vmatprep.subr.mxu0 0.0
    %97 = vmatpush1.msra.mxu0 0.0
    %98 = vmatprep.subr.mxu0 0.0
    %99 = vmatpush1.msra.mxu0 0.0
    %100 = vmatprep.subr.mxu0 0.0
    %101 = vmatpush1.msra.mxu0 0.0
    %102 = vmatprep.subr.mxu0 0.0
    %103 = vmatpush1.msra.mxu0 0.0
    %104 = vmatprep.subr.mxu0 0.0
    %105 = vmatpush1.msra.mxu0 0.0
    %106 = vmatprep.subr.mxu0 0.0
    %107 = vmatpush1.msra.mxu0 0.0
    %108 = vmatprep.subr.mxu0 0.0
    %109 = vmatpush1.msra.mxu0 0.0
    %110 = vmatprep.subr.mxu0 0.0
    %111 = vmatpush1.msra.mxu0 0.0
    %112 = vmatprep.subr.mxu0 0.0
    %113 = vmatpush1.msra.mxu0 0.0
    %114 = vmatprep.subr.mxu0 0.0
    %115 = vmatpush1.msra.mxu0 0.0
    %116 = vmatprep.subr.mxu0 0.0
    %117 = vmatpush1.msra.mxu0 0.0
    %118 = vmatprep.subr.mxu0 0.0
    %119 = vmatpush1.msra.mxu0 0.0
    %120 = vmatprep.mubr.f32.mxu0 0.0
    %v121 = vsub.f32 %v16, %v16
    %v122 = vand.u32 %v121, 4294901760
    %v123 = vsub.f32 %v121, %v122
    %v124 = vand.u32 %v123, 4294901760
    %125 = vmatmul.mubr.f32.gmra.mrb[0].mxu0 %v124
    %v126 = vpop.f32.mrb[0].mxu0
    %v127 = vadd.f32 %v38, %v126
    %v128 = vpop.f32.mrb[0].mxu0
    %129 = vdwg.mxu0
    %130 = vmatprep.subr.mxu0 0.0
    %v131 = vand.u32 %v17, 4294901760
    %v132 = vsub.f32 %v17, %v131
    %v133 = vand.u32 %v132, 4294901760
    %v134 = vsub.f32 %v132, %v133
    %v135 = vand.u32 %v134, 4294901760
    %136 = vmatpush1.msra.mxu0 %v135
    %137 = vmatprep.subr.mxu0 0.0
    %v138 = vand.u32 %v18, 4294901760
    %v139 = vsub.f32 %v18, %v138
    %v140 = vand.u32 %v139, 4294901760
    %v141 = vsub.f32 %v139, %v140
    %v142 = vand.u32 %v141, 4294901760
    %143 = vmatpush1.msra.mxu0 %v142
    %144 = vmatprep.subr.mxu0 0.0
    %v145 = vand.u32 %v19, 4294901760
    %v146 = vsub.f32 %v19, %v145
    %v147 = vand.u32 %v146, 4294901760
    %v148 = vsub.f32 %v146, %v147
    %v149 = vand.u32 %v148, 4294901760
    %150 = vmatpush1.msra.mxu0 %v149
    %151 = vmatprep.subr.mxu0 0.0
    %v152 = vand.u32 %v20, 4294901760
    %v153 = vsub.f32 %v20, %v152
    %v154 = vand.u32 %v153, 4294901760
    %v155 = vsub.f32 %v153, %v154
    %v156 = vand.u32 %v155, 4294901760
    %157 = vmatpush1.msra.mxu0 %v156
    %158 = vmatprep.subr.mxu0 0.0
    %v159 = vand.u32 %v21, 4294901760
    %v160 = vsub.f32 %v21, %v159
    %v161 = vand.u32 %v160, 4294901760
    %v162 = vsub.f32 %v160, %v161
    %v163 = vand.u32 %v162, 4294901760
    %164 = vmatpush1.msra.mxu0 %v163
    %165 = vmatprep.subr.mxu0 0.0
    %v166 = vand.u32 %v22, 4294901760
    %v167 = vsub.f32 %v22, %v166
    %v168 = vand.u32 %v167, 4294901760
    %v169 = vsub.f32 %v167, %v168
    %v170 = vand.u32 %v169, 4294901760
    %171 = vmatpush1.msra.mxu0 %v170
    %172 = vmatprep.subr.mxu0 0.0
    %v173 = vand.u32 %v23, 4294901760
    %v174 = vsub.f32 %v23, %v173
    %v175 = vand.u32 %v174, 4294901760
    %v176 = vsub.f32 %v174, %v175
    %v177 = vand.u32 %v176, 4294901760
    %178 = vmatpush1.msra.mxu0 %v177
    %179 = vmatprep.subr.mxu0 0.0
    %v180 = vand.u32 %v24, 4294901760
    %v181 = vsub.f32 %v24, %v180
    %v182 = vand.u32 %v181, 4294901760
    %v183 = vsub.f32 %v181, %v182
    %v184 = vand.u32 %v183, 4294901760
    %185 = vmatpush1.msra.mxu0 %v184
    %186 = vmatprep.subr.mxu0 0.0
    %v187 = vand.u32 %v25, 4294901760
    %v188 = vsub.f32 %v25, %v187
    %v189 = vand.u32 %v188, 4294901760
    %v190 = vsub.f32 %v188, %v189
    %v191 = vand.u32 %v190, 4294901760
    %192 = vmatpush1.msra.mxu0 %v191
    %193 = vmatprep.subr.mxu0 0.0
    %v194 = vand.u32 %v26, 4294901760
    %v195 = vsub.f32 %v26, %v194
    %v196 = vand.u32 %v195, 4294901760
    %v197 = vsub.f32 %v195, %v196
    %v198 = vand.u32 %v197, 4294901760
    %199 = vmatpush1.msra.mxu0 %v198
    %200 = vmatprep.subr.mxu0 0.0
    %v201 = vand.u32 %v27, 4294901760
    %v202 = vsub.f32 %v27, %v201
    %v203 = vand.u32 %v202, 4294901760
    %v204 = vsub.f32 %v202, %v203
    %v205 = vand.u32 %v204, 4294901760
    %206 = vmatpush1.msra.mxu0 %v205
    %207 = vmatprep.subr.mxu0 0.0
    %v208 = vand.u32 %v28, 4294901760
    %v209 = vsub.f32 %v28, %v208
    %v210 = vand.u32 %v209, 4294901760
    %v211 = vsub.f32 %v209, %v210
    %v212 = vand.u32 %v211, 4294901760
    %213 = vmatpush1.msra.mxu0 %v212
    %214 = vmatprep.subr.mxu0 0.0
    %v215 = vand.u32 %v29, 4294901760
    %v216 = vsub.f32 %v29, %v215
    %v217 = vand.u32 %v216, 4294901760
    %v218 = vsub.f32 %v216, %v217
    %v219 = vand.u32 %v218, 4294901760
    %220 = vmatpush1.msra.mxu0 %v219
    %221 = vmatprep.subr.mxu0 0.0
    %v222 = vand.u32 %v30, 4294901760
    %v223 = vsub.f32 %v30, %v222
    %v224 = vand.u32 %v223, 4294901760
    %v225 = vsub.f32 %v223, %v224
    %v226 = vand.u32 %v225, 4294901760
    %227 = vmatpush1.msra.mxu0 %v226
    %228 = vmatprep.subr.mxu0 0.0
    %v229 = vand.u32 %v31, 4294901760
    %v230 = vsub.f32 %v31, %v229
    %v231 = vand.u32 %v230, 4294901760
    %v232 = vsub.f32 %v230, %v231
    %v233 = vand.u32 %v232, 4294901760
    %234 = vmatpush1.msra.mxu0 %v233
    %235 = vmatprep.subr.mxu0 0.0
    %v236 = vand.u32 %v32, 4294901760
    %v237 = vsub.f32 %v32, %v236
    %v238 = vand.u32 %v237, 4294901760
    %v239 = vsub.f32 %v237, %v238
    %v240 = vand.u32 %v239, 4294901760
    %241 = vmatpush1.msra.mxu0 %v240
    %242 = vmatprep.subr.mxu0 0.0
    %243 = vmatpush1.msra.mxu0 0.0
    %244 = vmatprep.subr.mxu0 0.0
    %245 = vmatpush1.msra.mxu0 0.0
    %246 = vmatprep.subr.mxu0 0.0
    %247 = vmatpush1.msra.mxu0 0.0
    %248 = vmatprep.subr.mxu0 0.0
    %249 = vmatpush1.msra.mxu0 0.0
    %250 = vmatprep.subr.mxu0 0.0
    %251 = vmatpush1.msra.mxu0 0.0
    %252 = vmatprep.subr.mxu0 0.0
    %253 = vmatpush1.msra.mxu0 0.0
    %254 = vmatprep.subr.mxu0 0.0
    %255 = vmatpush1.msra.mxu0 0.0
    %256 = vmatprep.subr.mxu0 0.0
    %257 = vmatpush1.msra.mxu0 0.0
    %258 = vmatprep.subr.mxu0 0.0
    %259 = vmatpush1.msra.mxu0 0.0
    %260 = vmatprep.subr.mxu0 0.0
    %261 = vmatpush1.msra.mxu0 0.0
    %262 = vmatprep.subr.mxu0 0.0
    %263 = vmatpush1.msra.mxu0 0.0
    %264 = vmatprep.subr.mxu0 0.0
    %265 = vmatpush1.msra.mxu0 0.0
    %266 = vmatprep.subr.mxu0 0.0
    %267 = vmatpush1.msra.mxu0 0.0
    %268 = vmatprep.subr.mxu0 0.0
    %269 = vmatpush1.msra.mxu0 0.0
    %270 = vmatprep.subr.mxu0 0.0
    %271 = vmatpush1.msra.mxu0 0.0
    %272 = vmatprep.subr.mxu0 0.0
    %273 = vmatpush1.msra.mxu0 0.0
    %274 = vmatprep.mubr.f32.mxu0 0.0
    %275 = vmatmul.mubr.f32.gmra.mrb[0].mxu0 %v16
    %v276 = vpop.f32.mrb[0].mxu0
    %v277 = vadd.f32 %v127, %v276
    %v278 = vpop.f32.mrb[0].mxu0
    %279 = vdwg.mxu0
    %280 = vmatprep.subr.mxu0 0.0
    %v281 = vand.u32 %v17, 4294901760
    %v282 = vsub.f32 %v17, %v281
    %283 = vmatpush1.msra.mxu0 %v282
    %284 = vmatprep.subr.mxu0 0.0
    %v285 = vand.u32 %v18, 4294901760
    %v286 = vsub.f32 %v18, %v285
    %287 = vmatpush1.msra.mxu0 %v286
    %288 = vmatprep.subr.mxu0 0.0
    %v289 = vand.u32 %v19, 4294901760
    %v290 = vsub.f32 %v19, %v289
    %291 = vmatpush1.msra.mxu0 %v290
    %292 = vmatprep.subr.mxu0 0.0
    %v293 = vand.u32 %v20, 4294901760
    %v294 = vsub.f32 %v20, %v293
    %295 = vmatpush1.msra.mxu0 %v294
    %296 = vmatprep.subr.mxu0 0.0
    %v297 = vand.u32 %v21, 4294901760
    %v298 = vsub.f32 %v21, %v297
    %299 = vmatpush1.msra.mxu0 %v298
    %300 = vmatprep.subr.mxu0 0.0
    %v301 = vand.u32 %v22, 4294901760
    %v302 = vsub.f32 %v22, %v301
    %303 = vmatpush1.msra.mxu0 %v302
    %304 = vmatprep.subr.mxu0 0.0
    %v305 = vand.u32 %v23, 4294901760
    %v306 = vsub.f32 %v23, %v305
    %307 = vmatpush1.msra.mxu0 %v306
    %308 = vmatprep.subr.mxu0 0.0
    %v309 = vand.u32 %v24, 4294901760
    %v310 = vsub.f32 %v24, %v309
    %311 = vmatpush1.msra.mxu0 %v310
    %312 = vmatprep.subr.mxu0 0.0
    %v313 = vand.u32 %v25, 4294901760
    %v314 = vsub.f32 %v25, %v313
    %315 = vmatpush1.msra.mxu0 %v314
    %316 = vmatprep.subr.mxu0 0.0
    %v317 = vand.u32 %v26, 4294901760
    %v318 = vsub.f32 %v26, %v317
    %319 = vmatpush1.msra.mxu0 %v318
    %320 = vmatprep.subr.mxu0 0.0
    %v321 = vand.u32 %v27, 4294901760
    %v322 = vsub.f32 %v27, %v321
    %323 = vmatpush1.msra.mxu0 %v322
    %324 = vmatprep.subr.mxu0 0.0
    %v325 = vand.u32 %v28, 4294901760
    %v326 = vsub.f32 %v28, %v325
    %327 = vmatpush1.msra.mxu0 %v326
    %328 = vmatprep.subr.mxu0 0.0
    %v329 = vand.u32 %v29, 4294901760
    %v330 = vsub.f32 %v29, %v329
    %331 = vmatpush1.msra.mxu0 %v330
    %332 = vmatprep.subr.mxu0 0.0
    %v333 = vand.u32 %v30, 4294901760
    %v334 = vsub.f32 %v30, %v333
    %335 = vmatpush1.msra.mxu0 %v334
    %336 = vmatprep.subr.mxu0 0.0
    %v337 = vand.u32 %v31, 4294901760
    %v338 = vsub.f32 %v31, %v337
    %339 = vmatpush1.msra.mxu0 %v338
    %340 = vmatprep.subr.mxu0 0.0
    %v341 = vand.u32 %v32, 4294901760
    %v342 = vsub.f32 %v32, %v341
    %343 = vmatpush1.msra.mxu0 %v342
    %344 = vmatprep.subr.mxu0 0.0
    %345 = vmatpush1.msra.mxu0 0.0
    %346 = vmatprep.subr.mxu0 0.0
    %347 = vmatpush1.msra.mxu0 0.0
    %348 = vmatprep.subr.mxu0 0.0
    %349 = vmatpush1.msra.mxu0 0.0
    %350 = vmatprep.subr.mxu0 0.0
    %351 = vmatpush1.msra.mxu0 0.0
    %352 = vmatprep.subr.mxu0 0.0
    %353 = vmatpush1.msra.mxu0 0.0
    %354 = vmatprep.subr.mxu0 0.0
    %355 = vmatpush1.msra.mxu0 0.0
    %356 = vmatprep.subr.mxu0 0.0
    %357 = vmatpush1.msra.mxu0 0.0
    %358 = vmatprep.subr.mxu0 0.0
    %359 = vmatpush1.msra.mxu0 0.0
    %360 = vmatprep.subr.mxu0 0.0
    %361 = vmatpush1.msra.mxu0 0.0
    %362 = vmatprep.subr.mxu0 0.0
    %363 = vmatpush1.msra.mxu0 0.0
    %364 = vmatprep.subr.mxu0 0.0
    %365 = vmatpush1.msra.mxu0 0.0
    %366 = vmatprep.subr.mxu0 0.0
    %367 = vmatpush1.msra.mxu0 0.0
    %368 = vmatprep.subr.mxu0 0.0
    %369 = vmatpush1.msra.mxu0 0.0
    %370 = vmatprep.subr.mxu0 0.0
    %371 = vmatpush1.msra.mxu0 0.0
    %372 = vmatprep.subr.mxu0 0.0
    %373 = vmatpush1.msra.mxu0 0.0
    %374 = vmatprep.subr.mxu0 0.0
    %375 = vmatpush1.msra.mxu0 0.0
    %376 = vmatprep.mubr.f32.mxu0 0.0
    %v377 = vsub.f32 %v16, %v16
    %378 = vmatmul.mubr.f32.gmra.mrb[0].mxu0 %v377
    %v379 = vpop.f32.mrb[0].mxu0
    %v380 = vadd.f32 %v277, %v379
    %v381 = vpop.f32.mrb[0].mxu0
    %382 = vdwg.mxu0
    %383 = vmatprep.subr.mxu0 0.0
    %v384 = vand.u32 %v17, 4294901760
    %385 = vmatpush1.msra.mxu0 %v384
    %386 = vmatprep.subr.mxu0 0.0
    %v387 = vand.u32 %v18, 4294901760
    %388 = vmatpush1.msra.mxu0 %v387
    %389 = vmatprep.subr.mxu0 0.0
    %v390 = vand.u32 %v19, 4294901760
    %391 = vmatpush1.msra.mxu0 %v390
    %392 = vmatprep.subr.mxu0 0.0
    %v393 = vand.u32 %v20, 4294901760
    %394 = vmatpush1.msra.mxu0 %v393
    %395 = vmatprep.subr.mxu0 0.0
    %v396 = vand.u32 %v21, 4294901760
    %397 = vmatpush1.msra.mxu0 %v396
    %398 = vmatprep.subr.mxu0 0.0
    %v399 = vand.u32 %v22, 4294901760
    %400 = vmatpush1.msra.mxu0 %v399
    %401 = vmatprep.subr.mxu0 0.0
    %v402 = vand.u32 %v23, 4294901760
    %403 = vmatpush1.msra.mxu0 %v402
    %404 = vmatprep.subr.mxu0 0.0
    %v405 = vand.u32 %v24, 4294901760
    %406 = vmatpush1.msra.mxu0 %v405
    %407 = vmatprep.subr.mxu0 0.0
    %v408 = vand.u32 %v25, 4294901760
    %409 = vmatpush1.msra.mxu0 %v408
    %410 = vmatprep.subr.mxu0 0.0
    %v411 = vand.u32 %v26, 4294901760
    %412 = vmatpush1.msra.mxu0 %v411
    %413 = vmatprep.subr.mxu0 0.0
    %v414 = vand.u32 %v27, 4294901760
    %415 = vmatpush1.msra.mxu0 %v414
    %416 = vmatprep.subr.mxu0 0.0
    %v417 = vand.u32 %v28, 4294901760
    %418 = vmatpush1.msra.mxu0 %v417
    %419 = vmatprep.subr.mxu0 0.0
    %v420 = vand.u32 %v29, 4294901760
    %421 = vmatpush1.msra.mxu0 %v420
    %422 = vmatprep.subr.mxu0 0.0
    %v423 = vand.u32 %v30, 4294901760
    %424 = vmatpush1.msra.mxu0 %v423
    %425 = vmatprep.subr.mxu0 0.0
    %v426 = vand.u32 %v31, 4294901760
    %427 = vmatpush1.msra.mxu0 %v426
    %428 = vmatprep.subr.mxu0 0.0
    %v429 = vand.u32 %v32, 4294901760
    %430 = vmatpush1.msra.mxu0 %v429
    %431 = vmatprep.subr.mxu0 0.0
    %432 = vmatpush1.msra.mxu0 0.0
    %433 = vmatprep.subr.mxu0 0.0
    %434 = vmatpush1.msra.mxu0 0.0
    %435 = vmatprep.subr.mxu0 0.0
    %436 = vmatpush1.msra.mxu0 0.0
    %437 = vmatprep.subr.mxu0 0.0
    %438 = vmatpush1.msra.mxu0 0.0
    %439 = vmatprep.subr.mxu0 0.0
    %440 = vmatpush1.msra.mxu0 0.0
    %441 = vmatprep.subr.mxu0 0.0
    %442 = vmatpush1.msra.mxu0 0.0
    %443 = vmatprep.subr.mxu0 0.0
    %444 = vmatpush1.msra.mxu0 0.0
    %445 = vmatprep.subr.mxu0 0.0
    %446 = vmatpush1.msra.mxu0 0.0
    %447 = vmatprep.subr.mxu0 0.0
    %448 = vmatpush1.msra.mxu0 0.0
    %449 = vmatprep.subr.mxu0 0.0
    %450 = vmatpush1.msra.mxu0 0.0
    %451 = vmatprep.subr.mxu0 0.0
    %452 = vmatpush1.msra.mxu0 0.0
    %453 = vmatprep.subr.mxu0 0.0
    %454 = vmatpush1.msra.mxu0 0.0
    %455 = vmatprep.subr.mxu0 0.0
    %456 = vmatpush1.msra.mxu0 0.0
    %457 = vmatprep.subr.mxu0 0.0
    %458 = vmatpush1.msra.mxu0 0.0
    %459 = vmatprep.subr.mxu0 0.0
    %460 = vmatpush1.msra.mxu0 0.0
    %461 = vmatprep.subr.mxu0 0.0
    %462 = vmatpush1.msra.mxu0 0.0
    %463 = vmatprep.mubr.f32.mxu0 0.0
    %v464 = vsub.f32 %v16, %v16
    %v465 = vand.u32 %v464, 4294901760
    %466 = vmatmul.mubr.f32.gmra.mrb[0].mxu0 %v465
    %v467 = vpop.f32.mrb[0].mxu0
    %v468 = vadd.f32 %v380, %v467
    %v469 = vpop.f32.mrb[0].mxu0
    %470 = vdwg.mxu0
    %471 = vmatprep.subr.mxu0 0.0
    %v472 = vand.u32 %v17, 4294901760
    %v473 = vsub.f32 %v17, %v472
    %v474 = vand.u32 %v473, 4294901760
    %475 = vmatpush1.msra.mxu0 %v474
    %476 = vmatprep.subr.mxu0 0.0
    %v477 = vand.u32 %v18, 4294901760
    %v478 = vsub.f32 %v18, %v477
    %v479 = vand.u32 %v478, 4294901760
    %480 = vmatpush1.msra.mxu0 %v479
    %481 = vmatprep.subr.mxu0 0.0
    %v482 = vand.u32 %v19, 4294901760
    %v483 = vsub.f32 %v19, %v482
    %v484 = vand.u32 %v483, 4294901760
    %485 = vmatpush1.msra.mxu0 %v484
    %486 = vmatprep.subr.mxu0 0.0
    %v487 = vand.u32 %v20, 4294901760
    %v488 = vsub.f32 %v20, %v487
    %v489 = vand.u32 %v488, 4294901760
    %490 = vmatpush1.msra.mxu0 %v489
    %491 = vmatprep.subr.mxu0 0.0
    %v492 = vand.u32 %v21, 4294901760
    %v493 = vsub.f32 %v21, %v492
    %v494 = vand.u32 %v493, 4294901760
    %495 = vmatpush1.msra.mxu0 %v494
    %496 = vmatprep.subr.mxu0 0.0
    %v497 = vand.u32 %v22, 4294901760
    %v498 = vsub.f32 %v22, %v497
    %v499 = vand.u32 %v498, 4294901760
    %500 = vmatpush1.msra.mxu0 %v499
    %501 = vmatprep.subr.mxu0 0.0
    %v502 = vand.u32 %v23, 4294901760
    %v503 = vsub.f32 %v23, %v502
    %v504 = vand.u32 %v503, 4294901760
    %505 = vmatpush1.msra.mxu0 %v504
    %506 = vmatprep.subr.mxu0 0.0
    %v507 = vand.u32 %v24, 4294901760
    %v508 = vsub.f32 %v24, %v507
    %v509 = vand.u32 %v508, 4294901760
    %510 = vmatpush1.msra.mxu0 %v509
    %511 = vmatprep.subr.mxu0 0.0
    %v512 = vand.u32 %v25, 4294901760
    %v513 = vsub.f32 %v25, %v512
    %v514 = vand.u32 %v513, 4294901760
    %515 = vmatpush1.msra.mxu0 %v514
    %516 = vmatprep.subr.mxu0 0.0
    %v517 = vand.u32 %v26, 4294901760
    %v518 = vsub.f32 %v26, %v517
    %v519 = vand.u32 %v518, 4294901760
    %520 = vmatpush1.msra.mxu0 %v519
    %521 = vmatprep.subr.mxu0 0.0
    %v522 = vand.u32 %v27, 4294901760
    %v523 = vsub.f32 %v27, %v522
    %v524 = vand.u32 %v523, 4294901760
    %525 = vmatpush1.msra.mxu0 %v524
    %526 = vmatprep.subr.mxu0 0.0
    %v527 = vand.u32 %v28, 4294901760
    %v528 = vsub.f32 %v28, %v527
    %v529 = vand.u32 %v528, 4294901760
    %530 = vmatpush1.msra.mxu0 %v529
    %531 = vmatprep.subr.mxu0 0.0
    %v532 = vand.u32 %v29, 4294901760
    %v533 = vsub.f32 %v29, %v532
    %v534 = vand.u32 %v533, 4294901760
    %535 = vmatpush1.msra.mxu0 %v534
    %536 = vmatprep.subr.mxu0 0.0
    %v537 = vand.u32 %v30, 4294901760
    %v538 = vsub.f32 %v30, %v537
    %v539 = vand.u32 %v538, 4294901760
    %540 = vmatpush1.msra.mxu0 %v539
    %541 = vmatprep.subr.mxu0 0.0
    %v542 = vand.u32 %v31, 4294901760
    %v543 = vsub.f32 %v31, %v542
    %v544 = vand.u32 %v543, 4294901760
    %545 = vmatpush1.msra.mxu0 %v544
    %546 = vmatprep.subr.mxu0 0.0
    %v547 = vand.u32 %v32, 4294901760
    %v548 = vsub.f32 %v32, %v547
    %v549 = vand.u32 %v548, 4294901760
    %550 = vmatpush1.msra.mxu0 %v549
    %551 = vmatprep.subr.mxu0 0.0
    %552 = vmatpush1.msra.mxu0 0.0
    %553 = vmatprep.subr.mxu0 0.0
    %554 = vmatpush1.msra.mxu0 0.0
    %555 = vmatprep.subr.mxu0 0.0
    %556 = vmatpush1.msra.mxu0 0.0
    %557 = vmatprep.subr.mxu0 0.0
    %558 = vmatpush1.msra.mxu0 0.0
    %559 = vmatprep.subr.mxu0 0.0
    %560 = vmatpush1.msra.mxu0 0.0
    %561 = vmatprep.subr.mxu0 0.0
    %562 = vmatpush1.msra.mxu0 0.0
    %563 = vmatprep.subr.mxu0 0.0
    %564 = vmatpush1.msra.mxu0 0.0
    %565 = vmatprep.subr.mxu0 0.0
    %566 = vmatpush1.msra.mxu0 0.0
    %567 = vmatprep.subr.mxu0 0.0
    %568 = vmatpush1.msra.mxu0 0.0
    %569 = vmatprep.subr.mxu0 0.0
    %570 = vmatpush1.msra.mxu0 0.0
    %571 = vmatprep.subr.mxu0 0.0
    %572 = vmatpush1.msra.mxu0 0.0
    %573 = vmatprep.subr.mxu0 0.0
    %574 = vmatpush1.msra.mxu0 0.0
    %575 = vmatprep.subr.mxu0 0.0
    %576 = vmatpush1.msra.mxu0 0.0
    %577 = vmatprep.subr.mxu0 0.0
    %578 = vmatpush1.msra.mxu0 0.0
    %579 = vmatprep.subr.mxu0 0.0
    %580 = vmatpush1.msra.mxu0 0.0
    %581 = vmatprep.subr.mxu0 0.0
    %582 = vmatpush1.msra.mxu0 0.0
    %583 = vmatprep.mubr.f32.mxu0 0.0
    %584 = vmatmul.mubr.f32.gmra.mrb[0].mxu0 %v16
    %v585 = vpop.f32.mrb[0].mxu0
    %v586 = vadd.f32 %v468, %v585
    %v587 = vpop.f32.mrb[0].mxu0
    %588 = vdwg.mxu0
    %589 = vmatprep.subr.mxu0 0.0
    %v590 = vand.u32 %v17, 4294901760
    %591 = vmatpush1.msra.mxu0 %v590
    %592 = vmatprep.subr.mxu0 0.0
    %v593 = vand.u32 %v18, 4294901760
    %594 = vmatpush1.msra.mxu0 %v593
    %595 = vmatprep.subr.mxu0 0.0
    %v596 = vand.u32 %v19, 4294901760
    %597 = vmatpush1.msra.mxu0 %v596
    %598 = vmatprep.subr.mxu0 0.0
    %v599 = vand.u32 %v20, 4294901760
    %600 = vmatpush1.msra.mxu0 %v599
    %601 = vmatprep.subr.mxu0 0.0
    %v602 = vand.u32 %v21, 4294901760
    %603 = vmatpush1.msra.mxu0 %v602
    %604 = vmatprep.subr.mxu0 0.0
    %v605 = vand.u32 %v22, 4294901760
    %606 = vmatpush1.msra.mxu0 %v605
    %607 = vmatprep.subr.mxu0 0.0
    %v608 = vand.u32 %v23, 4294901760
    %609 = vmatpush1.msra.mxu0 %v608
    %610 = vmatprep.subr.mxu0 0.0
    %v611 = vand.u32 %v24, 4294901760
    %612 = vmatpush1.msra.mxu0 %v611
    %613 = vmatprep.subr.mxu0 0.0
    %v614 = vand.u32 %v25, 4294901760
    %615 = vmatpush1.msra.mxu0 %v614
    %616 = vmatprep.subr.mxu0 0.0
    %v617 = vand.u32 %v26, 4294901760
    %618 = vmatpush1.msra.mxu0 %v617
    %619 = vmatprep.subr.mxu0 0.0
    %v620 = vand.u32 %v27, 4294901760
    %621 = vmatpush1.msra.mxu0 %v620
    %622 = vmatprep.subr.mxu0 0.0
    %v623 = vand.u32 %v28, 4294901760
    %624 = vmatpush1.msra.mxu0 %v623
    %625 = vmatprep.subr.mxu0 0.0
    %v626 = vand.u32 %v29, 4294901760
    %627 = vmatpush1.msra.mxu0 %v626
    %628 = vmatprep.subr.mxu0 0.0
    %v629 = vand.u32 %v30, 4294901760
    %630 = vmatpush1.msra.mxu0 %v629
    %631 = vmatprep.subr.mxu0 0.0
    %v632 = vand.u32 %v31, 4294901760
    %633 = vmatpush1.msra.mxu0 %v632
    %634 = vmatprep.subr.mxu0 0.0
    %v635 = vand.u32 %v32, 4294901760
    %636 = vmatpush1.msra.mxu0 %v635
    %637 = vmatprep.subr.mxu0 0.0
    %638 = vmatpush1.msra.mxu0 0.0
    %639 = vmatprep.subr.mxu0 0.0
    %640 = vmatpush1.msra.mxu0 0.0
    %641 = vmatprep.subr.mxu0 0.0
    %642 = vmatpush1.msra.mxu0 0.0
    %643 = vmatprep.subr.mxu0 0.0
    %644 = vmatpush1.msra.mxu0 0.0
    %645 = vmatprep.subr.mxu0 0.0
    %646 = vmatpush1.msra.mxu0 0.0
    %647 = vmatprep.subr.mxu0 0.0
    %648 = vmatpush1.msra.mxu0 0.0
    %649 = vmatprep.subr.mxu0 0.0
    %650 = vmatpush1.msra.mxu0 0.0
    %651 = vmatprep.subr.mxu0 0.0
    %652 = vmatpush1.msra.mxu0 0.0
    %653 = vmatprep.subr.mxu0 0.0
    %654 = vmatpush1.msra.mxu0 0.0
    %655 = vmatprep.subr.mxu0 0.0
    %656 = vmatpush1.msra.mxu0 0.0
    %657 = vmatprep.subr.mxu0 0.0
    %658 = vmatpush1.msra.mxu0 0.0
    %659 = vmatprep.subr.mxu0 0.0
    %660 = vmatpush1.msra.mxu0 0.0
    %661 = vmatprep.subr.mxu0 0.0
    %662 = vmatpush1.msra.mxu0 0.0
    %663 = vmatprep.subr.mxu0 0.0
    %664 = vmatpush1.msra.mxu0 0.0
    %665 = vmatprep.subr.mxu0 0.0
    %666 = vmatpush1.msra.mxu0 0.0
    %667 = vmatprep.subr.mxu0 0.0
    %668 = vmatpush1.msra.mxu0 0.0
    %669 = vmatprep.mubr.f32.mxu0 0.0
    %670 = vmatmul.mubr.f32.gmra.mrb[0].mxu0 %v16
    %v671 = vpop.f32.mrb[0].mxu0
    %v672 = vadd.f32 %v586, %v671
    %v673 = vpop.f32.mrb[0].mxu0
    %674 = vdwg.mxu0
    %vm675 = vcmask 64512
    %676 = vst.msk [vmem:[#allocation2] sm:$0xff] %vm675, %v672
    // Predicated region
    $region14: #{tpu_custom_call.1} parent=1 // pred_check
      _
    $region15: #{tpu_custom_call.1} parent=1 // pred_check_branch
      %678 = sbr.rel (0) target = $region17
    $region16: #{tpu_custom_call.1} parent=1 // pred_region
      %s680 = ssub.s32 128, 128
      %681 = vsyncadd [#allocation3], %s680
      %s683 = sshll.u32 [#allocation2], 4
      %s684 = int_to_ptr.vmem [resolvable:$true] %s683
      %686 = dma.vmem_to_hbm [thread:$0]  %s684, 128, %s3, [#allocation3]
    $region17: #{tpu_custom_call.1} parent=1 // pred_fallthru
      _
    // Predicated region
    $region18: #{tpu_custom_call.1} parent=1 // pred_check
      _
    $region19: #{tpu_custom_call.1} parent=1 // pred_check_branch
      %688 = sbr.rel (0) target = $region21
    $region20: #{tpu_custom_call.1} parent=1 // pred_region
      %689 = dma.done [#allocation3], 128
    $region21: #{tpu_custom_call.1} parent=1 // pred_fallthru
      _
    %690 = vsyncpa [#allocation3], 1

</llo_original>
